<compile_context>
chip_gen: v6e
topology: v6e:2x2x1
jax: 0.10.0
libtpu: 0.0.40
codegen_flags: <defaults>
</compile_context>

<pallas_src>
import functools

import jax
import jax.numpy as jnp
from jax.experimental import pallas as pl
from jax.experimental.pallas import tpu as pltpu


FILTER_SIZES = (2, 3, 4)
N_FILTERS = 8
EMB_DIM = 32
VOCAB = 50
N_LABELS = 5
PAD_INDEX = 2

LANE = 128                                    # lane-dense padding width
TOTAL_TAPS = sum(FILTER_SIZES)                # 9
CONV_COLS = TOTAL_TAPS * N_FILTERS            # 72  (padded to LANE)
HIDDEN = len(FILTER_SIZES) * N_FILTERS        # 24
NEG_BIG = -1e30


# --------------------------------------------------------------------------
# Single fused kernel: embed -> conv+pool (all fs) -> linear -> cross-entropy
# --------------------------------------------------------------------------
def _fused_forward_kernel(tok_ref, y_ref, table_ref, wconv_ref, bconv_ref,
                          wlin_ref, blin_ref, scores_ref, loss_ref,
                          *, bsz, seq_len):
    bt = bsz * seq_len

    # 1) Embedding gather via one-hot matmul on the MXU (table resident VMEM).
    tok = tok_ref[...]                                              # (B*T, 1) i32
    vocab_iota = jax.lax.broadcasted_iota(jnp.int32, (bt, VOCAB), 1)
    onehot_tok = (tok == vocab_iota).astype(jnp.float32)            # (B*T, V)
    emb_flat = jnp.dot(onehot_tok, table_ref[...],
                       preferred_element_type=jnp.float32)          # (B*T, E)

    # 2) One wide matmul covering every tap of every filter size (N padded
    #    to 128 lanes).  Columns are ordered [fs2 tap0, fs2 tap1, fs3 tap0..2,
    #    fs4 tap0..3], 8 filters each.
    proj = jnp.dot(emb_flat, wconv_ref[...],
                   preferred_element_type=jnp.float32)              # (B*T, 128)
    proj = proj.reshape(bsz, seq_len, LANE)                         # (B, T, 128)

    # 3) Tap-sum via time-shifted slices (VPU), max-pool over time, then
    #    bias + ReLU after the pool.
    pooled_parts = []
    col = 0
    for fs in FILTER_SIZES:
        t_out = seq_len - fs + 1
        acc = proj[:, 0:t_out, col:col + N_FILTERS]
        col += N_FILTERS
        for i in range(1, fs):
            acc = acc + proj[:, i:i + t_out, col:col + N_FILTERS]
            col += N_FILTERS
        pooled_parts.append(jnp.max(acc, axis=1))                   # (B, nf)
    cat = jnp.concatenate(pooled_parts, axis=1)                     # (B, 24)
    cat = jnp.maximum(cat + bconv_ref[...], 0.0)                    # bias + ReLU

    # 4) Final linear; scores padded to 128 lanes (lane-dense store).
    scores = (jnp.dot(cat, wlin_ref[...],
                      preferred_element_type=jnp.float32)
              + blin_ref[...])                                      # (B, 128)
    scores_ref[...] = scores

    # 5) Cross-entropy over the first N_LABELS lanes; label gather via
    #    iota compare against y (no one-hot input).
    lane_iota = jax.lax.broadcasted_iota(jnp.int32, (bsz, LANE), 1)
    s = jnp.where(lane_iota < N_LABELS, scores, NEG_BIG)
    m = jnp.max(s, axis=-1, keepdims=True)
    lse = m + jnp.log(jnp.sum(jnp.exp(s - m), axis=-1, keepdims=True))
    tgt = jnp.sum(jnp.where(lane_iota == y_ref[...], scores, 0.0),
                  axis=-1, keepdims=True)
    nll = lse - tgt                                                 # (B, 1)
    loss_ref[...] = jnp.mean(nll).reshape(1, 1)


# --------------------------------------------------------------------------
# Parameter packing (trace-time; constant-folded under jit)
# --------------------------------------------------------------------------
def _pack_params(params):
    w_blocks, b_blocks = [], []
    for fs in FILTER_SIZES:
        w = params[f"conv_w_{fs}"]                 # (fs, E, nf)
        for i in range(fs):
            w_blocks.append(w[i])                  # (E, nf)
        b_blocks.append(params[f"conv_b_{fs}"])    # (1, nf)
    w_all = jnp.concatenate(w_blocks, axis=1)      # (E, 72)
    w_all = jnp.pad(w_all, ((0, 0), (0, LANE - CONV_COLS)))
    b_all = jnp.concatenate(b_blocks, axis=1)      # (1, 24)
    lin_w = jnp.pad(params["lin_w"], ((0, 0), (0, LANE - N_LABELS)))  # (24, 128)
    lin_b = jnp.pad(params["lin_b"], ((0, 0), (0, LANE - N_LABELS)))  # (1, 128)
    return w_all, b_all, lin_w, lin_b


# --------------------------------------------------------------------------
# Forward wrapper: one pallas_call for the whole model
# --------------------------------------------------------------------------
def cnn_classifier_forward(params, x_tokens, y):
    bsz, seq_len = x_tokens.shape
    w_all, b_all, lin_w, lin_b = _pack_params(params)
    tok = x_tokens.reshape(bsz * seq_len, 1).astype(jnp.int32)
    y2 = y.reshape(bsz, 1).astype(jnp.int32)

    scores_pad, loss = pl.pallas_call(
        functools.partial(_fused_forward_kernel, bsz=bsz, seq_len=seq_len),
        out_shape=(jax.ShapeDtypeStruct((bsz, LANE), jnp.float32),
                   jax.ShapeDtypeStruct((1, 1), jnp.float32)),
        in_specs=[pl.BlockSpec(memory_space=pltpu.MemorySpace.VMEM)] * 7,
        out_specs=(pl.BlockSpec(memory_space=pltpu.MemorySpace.VMEM),
                   pl.BlockSpec(memory_space=pltpu.MemorySpace.VMEM)),
    )(tok, y2, params["embedding"], w_all, b_all, lin_w, lin_b)

    return scores_pad[:, :N_LABELS], loss[0, 0]


# --------------------------------------------------------------------------
# Init + pure-JAX reference (original op order: conv+bias -> ReLU -> maxpool)
# --------------------------------------------------------------------------
def init_params(key):
    keys = jax.random.split(key, 3 + 2 * len(FILTER_SIZES))
    params = {}
    emb = jax.random.normal(keys[0], (VOCAB, EMB_DIM), jnp.float32) * 0.1
    emb = emb.at[PAD_INDEX].set(0.0)               # padding_idx behavior
    params["embedding"] = emb
    for j, fs in enumerate(FILTER_SIZES):
        # PyTorch conv weight is (nf, 1, fs, E); stored here as (fs, E, nf).
        params[f"conv_w_{fs}"] = jax.random.normal(
            keys[1 + 2 * j], (fs, EMB_DIM, N_FILTERS), jnp.float32) * 0.1
        params[f"conv_b_{fs}"] = jax.random.normal(
            keys[2 + 2 * j], (1, N_FILTERS), jnp.float32) * 0.1
    params["lin_w"] = jax.random.normal(
        keys[-2], (HIDDEN, N_LABELS), jnp.float32) * 0.1
    params["lin_b"] = jax.random.normal(keys[-1], (1, N_LABELS), jnp.float32) * 0.1
    return params


def reference_forward(params, x_tokens, y):
    emb = params["embedding"][x_tokens]
    pooled = []
    for fs in FILTER_SIZES:
        w = params[f"conv_w_{fs}"]
        b = params[f"conv_b_{fs}"]
        t_out = emb.shape[1] - fs + 1
        conv = sum(jnp.einsum("bte,ef->btf", emb[:, i:i + t_out, :], w[i])
                   for i in range(fs)) + b
        conv = jnp.maximum(conv, 0.0)
        pooled.append(jnp.max(conv, axis=1))
    cat = jnp.concatenate(pooled, axis=1)
    scores = cat @ params["lin_w"] + params["lin_b"]
    logz = jax.scipy.special.logsumexp(scores, axis=-1)
    nll = logz - jnp.take_along_axis(scores, y[:, None], axis=1)[:, 0]
    return scores, jnp.mean(nll)


if __name__ == "__main__":
    key = jax.random.PRNGKey(0)
    k_p, k_x, k_y = jax.random.split(key, 3)
    params = init_params(k_p)

    B, T = 2, 16
    x_tokens = jax.random.randint(k_x, (B, T), 0, VOCAB, dtype=jnp.int32)
    y = jax.random.randint(k_y, (B,), 0, N_LABELS, dtype=jnp.int32)

    fwd = jax.jit(cnn_classifier_forward)
    scores, loss = fwd(params, x_tokens, y)
    scores = jax.block_until_ready(scores)
    loss = jax.block_until_ready(loss)

    ref_scores, ref_loss = reference_forward(params, x_tokens, y)
    assert jnp.allclose(scores, ref_scores, atol=1e-4, rtol=1e-4), (
        scores, ref_scores)
    assert jnp.allclose(loss, ref_loss, atol=1e-4, rtol=1e-4), (loss, ref_loss)

    print("KERNEL_OK")
</pallas_src>

<mosaic_0001>
module attributes {stable_mosaic.version = 11 : i64} {
  func.func @_fused_forward_kernel(%arg0: memref<32x1xi32, #tpu.memory_space<vmem>>, %arg1: memref<2x1xi32, #tpu.memory_space<vmem>>, %arg2: memref<50x32xf32, #tpu.memory_space<vmem>>, %arg3: memref<32x128xf32, #tpu.memory_space<vmem>>, %arg4: memref<1x24xf32, #tpu.memory_space<vmem>>, %arg5: memref<24x128xf32, #tpu.memory_space<vmem>>, %arg6: memref<1x128xf32, #tpu.memory_space<vmem>>, %arg7: memref<2x128xf32, #tpu.memory_space<vmem>>, %arg8: memref<1x1xf32, #tpu.memory_space<vmem>>) attributes {dimension_semantics = [], scalar_prefetch = 0 : i64, scratch_operands = 0 : i64, tpu.core_type = #tpu.core_type<tc>} {
    %c0 = arith.constant 0 : index
    %c0_0 = arith.constant 0 : index
    %0 = vector.load %arg0[%c0, %c0_0] : memref<32x1xi32, #tpu.memory_space<vmem>>, vector<32x1xi32>
    %1 = tpu.iota {dimensions = array<i32: 1>} : vector<32x50xi32>
    %2 = vector.broadcast %0 : vector<32x1xi32> to vector<32x50xi32>
    %3 = arith.cmpi eq, %2, %1 : vector<32x50xi32>
    %4 = arith.extui %3 : vector<32x50xi1> to vector<32x50xi32>
    %5 = arith.sitofp %4 : vector<32x50xi32> to vector<32x50xf32>
    %c0_1 = arith.constant 0 : index
    %c0_2 = arith.constant 0 : index
    %6 = vector.load %arg2[%c0_1, %c0_2] : memref<50x32xf32, #tpu.memory_space<vmem>>, vector<50x32xf32>
    %cst = arith.constant dense<0.000000e+00> : vector<32x32xf32>
    %7 = tpu.matmul %5, %6, %cst {dimension_numbers = #tpu.dot_dimension_numbers<[1], [0], [0], [1], [0, 0, 1, 1], [], []>} : vector<32x50xf32>, vector<50x32xf32>, vector<32x32xf32> -> vector<32x32xf32>
    %c0_3 = arith.constant 0 : index
    %c0_4 = arith.constant 0 : index
    %8 = vector.load %arg3[%c0_3, %c0_4] : memref<32x128xf32, #tpu.memory_space<vmem>>, vector<32x128xf32>
    %cst_5 = arith.constant dense<0.000000e+00> : vector<32x128xf32>
    %9 = tpu.matmul %7, %8, %cst_5 {dimension_numbers = #tpu.dot_dimension_numbers<[1], [0], [0], [1], [0, 0, 1, 1], [], []>} : vector<32x32xf32>, vector<32x128xf32>, vector<32x128xf32> -> vector<32x128xf32>
    %10 = vector.shape_cast %9 : vector<32x128xf32> to vector<2x16x128xf32>
    %11 = vector.extract_strided_slice %10 {offsets = [0, 0, 0], sizes = [2, 15, 8], strides = [1, 1, 1]} : vector<2x16x128xf32> to vector<2x15x8xf32>
    %12 = vector.extract_strided_slice %10 {offsets = [0, 1, 8], sizes = [2, 15, 8], strides = [1, 1, 1]} : vector<2x16x128xf32> to vector<2x15x8xf32>
    %13 = arith.addf %11, %12 : vector<2x15x8xf32>
    %cst_6 = arith.constant dense<0xFF800000> : vector<2x8xf32>
    %14 = vector.multi_reduction <maximumf>, %13, %cst_6 [1] : vector<2x15x8xf32> to vector<2x8xf32>
    %15 = vector.extract_strided_slice %10 {offsets = [0, 0, 16], sizes = [2, 14, 8], strides = [1, 1, 1]} : vector<2x16x128xf32> to vector<2x14x8xf32>
    %16 = vector.extract_strided_slice %10 {offsets = [0, 1, 24], sizes = [2, 14, 8], strides = [1, 1, 1]} : vector<2x16x128xf32> to vector<2x14x8xf32>
    %17 = arith.addf %15, %16 : vector<2x14x8xf32>
    %18 = vector.extract_strided_slice %10 {offsets = [0, 2, 32], sizes = [2, 14, 8], strides = [1, 1, 1]} : vector<2x16x128xf32> to vector<2x14x8xf32>
    %19 = arith.addf %17, %18 : vector<2x14x8xf32>
    %cst_7 = arith.constant dense<0xFF800000> : vector<2x8xf32>
    %20 = vector.multi_reduction <maximumf>, %19, %cst_7 [1] : vector<2x14x8xf32> to vector<2x8xf32>
    %21 = vector.extract_strided_slice %10 {offsets = [0, 0, 40], sizes = [2, 13, 8], strides = [1, 1, 1]} : vector<2x16x128xf32> to vector<2x13x8xf32>
    %22 = vector.extract_strided_slice %10 {offsets = [0, 1, 48], sizes = [2, 13, 8], strides = [1, 1, 1]} : vector<2x16x128xf32> to vector<2x13x8xf32>
    %23 = arith.addf %21, %22 : vector<2x13x8xf32>
    %24 = vector.extract_strided_slice %10 {offsets = [0, 2, 56], sizes = [2, 13, 8], strides = [1, 1, 1]} : vector<2x16x128xf32> to vector<2x13x8xf32>
    %25 = arith.addf %23, %24 : vector<2x13x8xf32>
    %26 = vector.extract_strided_slice %10 {offsets = [0, 3, 64], sizes = [2, 13, 8], strides = [1, 1, 1]} : vector<2x16x128xf32> to vector<2x13x8xf32>
    %27 = arith.addf %25, %26 : vector<2x13x8xf32>
    %cst_8 = arith.constant dense<0xFF800000> : vector<2x8xf32>
    %28 = vector.multi_reduction <maximumf>, %27, %cst_8 [1] : vector<2x13x8xf32> to vector<2x8xf32>
    %29 = tpu.concatenate %14, %20, %28 in 1 : vector<2x8xf32>, vector<2x8xf32>, vector<2x8xf32> -> vector<2x24xf32>
    %c0_9 = arith.constant 0 : index
    %c0_10 = arith.constant 0 : index
    %30 = vector.load %arg4[%c0_9, %c0_10] : memref<1x24xf32, #tpu.memory_space<vmem>>, vector<1x24xf32>
    %31 = vector.broadcast %30 : vector<1x24xf32> to vector<2x24xf32>
    %32 = arith.addf %29, %31 : vector<2x24xf32>
    %cst_11 = arith.constant 0.000000e+00 : f32
    %33 = vector.broadcast %cst_11 : f32 to vector<2x24xf32>
    %34 = arith.maximumf %32, %33 : vector<2x24xf32>
    %c0_12 = arith.constant 0 : index
    %c0_13 = arith.constant 0 : index
    %35 = vector.load %arg5[%c0_12, %c0_13] : memref<24x128xf32, #tpu.memory_space<vmem>>, vector<24x128xf32>
    %cst_14 = arith.constant dense<0.000000e+00> : vector<2x128xf32>
    %36 = tpu.matmul %34, %35, %cst_14 {dimension_numbers = #tpu.dot_dimension_numbers<[1], [0], [0], [1], [0, 0, 1, 1], [], []>} : vector<2x24xf32>, vector<24x128xf32>, vector<2x128xf32> -> vector<2x128xf32>
    %c0_15 = arith.constant 0 : index
    %c0_16 = arith.constant 0 : index
    %37 = vector.load %arg6[%c0_15, %c0_16] : memref<1x128xf32, #tpu.memory_space<vmem>>, vector<1x128xf32>
    %38 = vector.broadcast %37 : vector<1x128xf32> to vector<2x128xf32>
    %39 = arith.addf %36, %38 : vector<2x128xf32>
    %c0_17 = arith.constant 0 : index
    %c0_18 = arith.constant 0 : index
    %40 = vector.load %arg7[%c0_17, %c0_18] : memref<2x128xf32, #tpu.memory_space<vmem>>, vector<2x128xf32>
    tpu.vector_store %arg7[%c0_17, %c0_18], %39 {strides = array<i32>} : memref<2x128xf32, #tpu.memory_space<vmem>>, vector<2x128xf32>,
    %41 = tpu.iota {dimensions = array<i32: 1>} : vector<2x128xi32>
    %c5_i32 = arith.constant 5 : i32
    %42 = vector.broadcast %c5_i32 : i32 to vector<2x128xi32>
    %43 = arith.cmpi slt, %41, %42 : vector<2x128xi32>
    %cst_19 = arith.constant -1.000000e+30 : f32
    %44 = vector.broadcast %cst_19 : f32 to vector<2x128xf32>
    %45 = arith.select %43, %39, %44 : vector<2x128xi1>, vector<2x128xf32>
    %cst_20 = arith.constant dense<0xFF800000> : vector<2xf32>
    %46 = vector.multi_reduction <maximumf>, %45, %cst_20 [1] : vector<2x128xf32> to vector<2xf32>
    %47 = vector.shape_cast %46 : vector<2xf32> to vector<2x1xf32>
    %48 = vector.broadcast %47 : vector<2x1xf32> to vector<2x128xf32>
    %49 = arith.subf %45, %48 : vector<2x128xf32>
    %50 = math.exp %49 : vector<2x128xf32>
    %cst_21 = arith.constant dense<0.000000e+00> : vector<2xf32>
    %51 = vector.multi_reduction <add>, %50, %cst_21 [1] : vector<2x128xf32> to vector<2xf32>
    %52 = vector.shape_cast %51 : vector<2xf32> to vector<2x1xf32>
    %53 = math.log %52 : vector<2x1xf32>
    %54 = arith.addf %47, %53 : vector<2x1xf32>
    %c0_22 = arith.constant 0 : index
    %c0_23 = arith.constant 0 : index
    %55 = vector.load %arg1[%c0_22, %c0_23] : memref<2x1xi32, #tpu.memory_space<vmem>>, vector<2x1xi32>
    %56 = vector.broadcast %55 : vector<2x1xi32> to vector<2x128xi32>
    %57 = arith.cmpi eq, %41, %56 : vector<2x128xi32>
    %cst_24 = arith.constant 0.000000e+00 : f32
    %58 = vector.broadcast %cst_24 : f32 to vector<2x128xf32>
    %59 = arith.select %57, %39, %58 : vector<2x128xi1>, vector<2x128xf32>
    %cst_25 = arith.constant dense<0.000000e+00> : vector<2xf32>
    %60 = vector.multi_reduction <add>, %59, %cst_25 [1] : vector<2x128xf32> to vector<2xf32>
    %61 = vector.shape_cast %60 : vector<2xf32> to vector<2x1xf32>
    %62 = arith.subf %54, %61 : vector<2x1xf32>
    %63 = vector.shape_cast %62 : vector<2x1xf32> to vector<1x2x1xf32>
    %cst_26 = arith.constant dense<0.000000e+00> : vector<1xf32>
    %64 = vector.multi_reduction <add>, %63, %cst_26 [1, 2] : vector<1x2x1xf32> to vector<1xf32>
    %65 = vector.shape_cast %64 : vector<1xf32> to vector<1x1x1xf32>
    %66 = vector.extract %65[0, 0, 0] : f32 from vector<1x1x1xf32>
    %cst_27 = arith.constant 2.000000e+00 : f32
    %67 = arith.divf %66, %cst_27 : f32
    %68 = vector.broadcast %67 : f32 to vector<1x1xf32>
    %c0_28 = arith.constant 0 : index
    %c0_29 = arith.constant 0 : index
    %69 = vector.load %arg8[%c0_28, %c0_29] : memref<1x1xf32, #tpu.memory_space<vmem>>, vector<1x1xf32>
    tpu.vector_store %arg8[%c0_28, %c0_29], %68 {strides = array<i32>} : memref<1x1xf32, #tpu.memory_space<vmem>>, vector<1x1xf32>,
    return
  }
}

</mosaic_0001>

<llo_original>
// kernel: cnn_classifier_forward.1
$region0: #{cnn_classifier_forward.1}
  #allocation0 [shape = 'u32[]', space=smem, size = 0x4, offset = 0x4, fixed_abs, tag = 'smem constant byte address 0x4 - core index']
  #allocation1 [shape = 'u32[144,128]{1,0:T(1,128)}', space=vmem, size = 0x12000, scoped, tag = 'internal scratch']
  %s0 = inlined_call_operand.vmem [shape: s32[32,1], index: 0, kind: input, shape index: {}]
  %s1 = inlined_call_operand.vmem [shape: s32[2,1], index: 1, kind: input, shape index: {}]
  %s2 = inlined_call_operand.vmem [shape: f32[50,32], index: 2, kind: input, shape index: {}]
  %s3 = inlined_call_operand.vmem [shape: f32[32,128], index: 3, kind: input, shape index: {}]
  %s4 = inlined_call_operand.vmem [shape: f32[1,24], index: 4, kind: input, shape index: {}]
  %s5 = inlined_call_operand.vmem [shape: f32[24,128], index: 5, kind: input, shape index: {}]
  %s6 = inlined_call_operand.vmem [shape: f32[1,128], index: 6, kind: input, shape index: {}]
  %s7 = inlined_call_operand.hbm [shape: f32[2,128], index: 7, kind: output, shape index: {0}]
  %s8 = inlined_call_operand.hbm [shape: f32[1,1], index: 8, kind: output, shape index: {1}]
  %9 = xla_tuple %s7, %s8
  %s10 = sld [smem:[#allocation0]]
  $region46: #{cnn_classifier_forward.1} parent=0
    _
  %s12 = ssub.s32 1, %s10
  %s13 = scalar_select 0, %s12, %s10
  $region1: #{cnn_classifier_forward.1} parent=0
    #allocation2 [shape = 'u8[1024]{0}', space=vmem, size = 0x400, scoped, tag = 'output window, operand 0, single buffered']
    #allocation3 [shape = 's32[1]{0}', space=sflag, size = 0x4, scoped, tag = 'scoped memory for cnn_classifier_forward.1']
    #allocation4 [shape = 'u8[512]{0}', space=vmem, size = 0x400, scoped, tag = 'output window, operand 1, single buffered']
    #allocation5 [shape = 's32[1]{0}', space=sflag, size = 0x4, scoped, tag = 'scoped memory for cnn_classifier_forward.1']
    %14 = vsyncpa [#allocation3], 0
    %15 = vsyncpa [#allocation5], 0
    // Predicated region
    $region2: #{cnn_classifier_forward.1} parent=1 // pred_check
      _
    $region3: #{cnn_classifier_forward.1} parent=1 // pred_check_branch
      %17 = sbr.rel (0) target = $region5
    $region4: #{cnn_classifier_forward.1} parent=1 // pred_region
      _
    $region5: #{cnn_classifier_forward.1} parent=1 // pred_fallthru
      _
    // Predicated region
    $region6: #{cnn_classifier_forward.1} parent=1 // pred_check
      _
    $region7: #{cnn_classifier_forward.1} parent=1 // pred_check_branch
      %19 = sbr.rel (0) target = $region9
    $region8: #{cnn_classifier_forward.1} parent=1 // pred_region
      _
    $region9: #{cnn_classifier_forward.1} parent=1 // pred_fallthru
      _
    // Predicated region
    $region10: #{cnn_classifier_forward.1} parent=1 // pred_check
      _
    $region11: #{cnn_classifier_forward.1} parent=1 // pred_check_branch
      %21 = sbr.rel (0) target = $region13
    $region12: #{cnn_classifier_forward.1} parent=1 // pred_region
      _
    $region13: #{cnn_classifier_forward.1} parent=1 // pred_fallthru
      _
    // Predicated region
    $region14: #{cnn_classifier_forward.1} parent=1 // pred_check
      _
    $region15: #{cnn_classifier_forward.1} parent=1 // pred_check_branch
      %23 = sbr.rel (0) target = $region17
    $region16: #{cnn_classifier_forward.1} parent=1 // pred_region
      _
    $region17: #{cnn_classifier_forward.1} parent=1 // pred_fallthru
      _
    // Predicated region
    $region18: #{cnn_classifier_forward.1} parent=1 // pred_check
      _
    $region19: #{cnn_classifier_forward.1} parent=1 // pred_check_branch
      %25 = sbr.rel (0) target = $region21
    $region20: #{cnn_classifier_forward.1} parent=1 // pred_region
      _
    $region21: #{cnn_classifier_forward.1} parent=1 // pred_fallthru
      _
    // Predicated region
    $region22: #{cnn_classifier_forward.1} parent=1 // pred_check
      _
    $region23: #{cnn_classifier_forward.1} parent=1 // pred_check_branch
      %27 = sbr.rel (0) target = $region25
    $region24: #{cnn_classifier_forward.1} parent=1 // pred_region
      _
    $region25: #{cnn_classifier_forward.1} parent=1 // pred_fallthru
      _
    // Predicated region
    $region26: #{cnn_classifier_forward.1} parent=1 // pred_check
      _
    $region27: #{cnn_classifier_forward.1} parent=1 // pred_check_branch
      %29 = sbr.rel (0) target = $region29
    $region28: #{cnn_classifier_forward.1} parent=1 // pred_region
      _
    $region29: #{cnn_classifier_forward.1} parent=1 // pred_fallthru
      _
    %v30 = vld [vmem:[%s0] sm:$0xff]
    %v31 = vld [vmem:[%s0 + $0x8] sm:$0xff]
    %v32 = vld [vmem:[%s0 + $0x10] sm:$0xff]
    %v33 = vld [vmem:[%s0 + $0x18] sm:$0xff]
    %v34 = vlaneseq
    %v35 = vand.u32 %v34, 127
    %36 = vset.pattern.permute.xlu0 0
    %37 = vperm.xlu0 %36, %v30
    %v38 = vpop.permute.xlu0 %37
    %39 = vset.pattern.permute.xlu0 0
    %40 = vperm.xlu0 %39, %v31
    %v41 = vpop.permute.xlu0 %40
    %42 = vset.pattern.permute.xlu0 0
    %43 = vperm.xlu0 %42, %v32
    %v44 = vpop.permute.xlu0 %43
    %45 = vset.pattern.permute.xlu0 0
    %46 = vperm.xlu0 %45, %v33
    %v47 = vpop.permute.xlu0 %46
    %vm48 = vcmp.eq.s32.totalorder %v38, %v35
    %vm49 = vcmp.eq.s32.totalorder %v41, %v35
    %vm50 = vcmp.eq.s32.totalorder %v44, %v35
    %vm51 = vcmp.eq.s32.totalorder %v47, %v35
    %v52 = vsel %vm48, 1, 0
    %v53 = vsel %vm49, 1, 0
    %v54 = vsel %vm50, 1, 0
    %v55 = vsel %vm51, 1, 0
    %v56 = vcvt.s32.f32 %v52
    %v57 = vcvt.s32.f32 %v53
    %v58 = vcvt.s32.f32 %v54
    %v59 = vcvt.s32.f32 %v55
    %v60 = vld [vmem:[%s2] sm:$0xff]
    %v61 = vld [vmem:[%s2 + $0x8] sm:$0xff]
    %v62 = vld [vmem:[%s2 + $0x10] sm:$0xff]
    %v63 = vld [vmem:[%s2 + $0x18] sm:$0xff]
    %v64 = vld [vmem:[%s2 + $0x20] sm:$0xff]
    %v65 = vld [vmem:[%s2 + $0x28] sm:$0xff]
    %v66 = vld [vmem:[%s2 + $0x30] sm:$0x3]
    %vm67 = vcmask 408576
    %v69 = vsel %vm67, %v56, 0
    %v72 = vsel %vm67, %v57, 0
    %v75 = vsel %vm67, %v58, 0
    %v78 = vsel %vm67, %v59, 0
    %vm80 = vcmask 1041408
    %v82 = vsel %vm80, %v66, 0
    %84 = vmatprep.subr.mxu0 0.0
    %85 = vmatpush1.msra.mxu0 0.0
    %86 = vmatprep.subr.mxu0 0.0
    %87 = vmatpush1.msra.mxu0 0.0
    %88 = vmatprep.subr.mxu0 0.0
    %89 = vmatpush1.msra.mxu0 0.0
    %90 = vmatprep.subr.mxu0 0.0
    %91 = vmatpush1.msra.mxu0 0.0
    %92 = vmatprep.subr.mxu0 0.0
    %93 = vmatpush1.msra.mxu0 0.0
    %94 = vmatprep.subr.mxu0 0.0
    %95 = vmatpush1.msra.mxu0 0.0
    %96 = vmatprep.subr.mxu0 0.0
    %97 = vmatpush1.msra.mxu0 0.0
    %98 = vmatprep.subr.mxu0 0.0
    %99 = vmatpush1.msra.mxu0 0.0
    %100 = vmatprep.subr.mxu0 0.0
    %101 = vmatpush1.msra.mxu0 0.0
    %102 = vmatprep.subr.mxu0 0.0
    %103 = vmatpush1.msra.mxu0 %v82
    %104 = vmatprep.subr.mxu0 0.0
    %105 = vmatpush1.msra.mxu0 %v65
    %106 = vmatprep.subr.mxu0 0.0
    %107 = vmatpush1.msra.mxu0 %v64
    %108 = vmatprep.subr.mxu0 0.0
    %109 = vmatpush1.msra.mxu0 %v63
    %110 = vmatprep.subr.mxu0 0.0
    %111 = vmatpush1.msra.mxu0 %v62
    %112 = vmatprep.subr.mxu0 0.0
    %113 = vmatpush1.msra.mxu0 %v61
    %114 = vmatprep.subr.mxu0 0.0
    %115 = vmatpush1.msra.mxu0 %v60
    %116 = vmatprep.subr.mxu0 0.0
    %117 = vmatpush2.msra.mxu0 0.0
    %118 = vmatprep.subr.mxu0 0.0
    %119 = vmatpush2.msra.mxu0 0.0
    %120 = vmatprep.subr.mxu0 0.0
    %121 = vmatpush2.msra.mxu0 0.0
    %122 = vmatprep.subr.mxu0 0.0
    %123 = vmatpush2.msra.mxu0 0.0
    %124 = vmatprep.subr.mxu0 0.0
    %125 = vmatpush2.msra.mxu0 0.0
    %126 = vmatprep.subr.mxu0 0.0
    %127 = vmatpush2.msra.mxu0 0.0
    %128 = vmatprep.subr.mxu0 0.0
    %129 = vmatpush2.msra.mxu0 0.0
    %130 = vmatprep.subr.mxu0 0.0
    %131 = vmatpush2.msra.mxu0 0.0
    %132 = vmatprep.subr.mxu0 0.0
    %133 = vmatpush2.msra.mxu0 0.0
    %134 = vmatprep.subr.mxu0 0.0
    %135 = vmatpush2.msra.mxu0 0.0
    %136 = vmatprep.subr.mxu0 0.0
    %137 = vmatpush2.msra.mxu0 0.0
    %138 = vmatprep.subr.mxu0 0.0
    %139 = vmatpush2.msra.mxu0 0.0
    %140 = vmatprep.subr.mxu0 0.0
    %141 = vmatpush2.msra.mxu0 0.0
    %142 = vmatprep.subr.mxu0 0.0
    %143 = vmatpush2.msra.mxu0 0.0
    %144 = vmatprep.subr.mxu0 0.0
    %145 = vmatpush2.msra.mxu0 0.0
    %146 = vmatprep.subr.mxu0 0.0
    %147 = vmatpush2.msra.mxu0 0.0
    %148 = vmatprep.mubr.f32.mxu0 0.0
    %149 = vmatmul.mubr.f32.gmra.mxu0 %v69
    %v150 = vpop.f32.mrf.mxu0
    %v151 = vadd.f32 0.0, %v150
    %v152 = vpop.f32.mrf.mxu0
    %153 = vmatprep.mubr.f32.mxu0 0.0
    %154 = vmatmul.mubr.f32.gmra.mxu0 %v72
    %v155 = vpop.f32.mrf.mxu0
    %v156 = vadd.f32 0.0, %v155
    %v157 = vpop.f32.mrf.mxu0
    %158 = vmatprep.mubr.f32.mxu0 0.0
    %159 = vmatmul.mubr.f32.gmra.mxu0 %v75
    %v160 = vpop.f32.mrf.mxu0
    %v161 = vadd.f32 0.0, %v160
    %v162 = vpop.f32.mrf.mxu0
    %163 = vmatprep.mubr.f32.mxu0 0.0
    %164 = vmatmul.mubr.f32.gmra.mxu0 %v78
    %v165 = vpop.f32.mrf.mxu0
    %v166 = vadd.f32 0.0, %v165
    %v167 = vpop.f32.mrf.mxu0
    %168 = vdwg.mxu0
    %v169 = vld [vmem:[%s3] sm:$0xff]
    %v170 = vld [vmem:[%s3 + $0x8] sm:$0xff]
    %v171 = vld [vmem:[%s3 + $0x10] sm:$0xff]
    %v172 = vld [vmem:[%s3 + $0x18] sm:$0xff]
    %vm173 = vcmask 261120
    %v175 = vsel %vm173, %v151, 0
    %v178 = vsel %vm173, %v156, 0
    %v181 = vsel %vm173, %v161, 0
    %v184 = vsel %vm173, %v166, 0
    %186 = vmatprep.subr.mxu0 0.0
    %187 = vmatpush1.msra.mxu0 0.0
    %188 = vmatprep.subr.mxu0 0.0
    %189 = vmatpush1.msra.mxu0 0.0
    %190 = vmatprep.subr.mxu0 0.0
    %191 = vmatpush1.msra.mxu0 0.0
    %192 = vmatprep.subr.mxu0 0.0
    %193 = vmatpush1.msra.mxu0 0.0
    %194 = vmatprep.subr.mxu0 0.0
    %195 = vmatpush1.msra.mxu0 0.0
    %196 = vmatprep.subr.mxu0 0.0
    %197 = vmatpush1.msra.mxu0 0.0
    %198 = vmatprep.subr.mxu0 0.0
    %199 = vmatpush1.msra.mxu0 0.0
    %200 = vmatprep.subr.mxu0 0.0
    %201 = vmatpush1.msra.mxu0 0.0
    %202 = vmatprep.subr.mxu0 0.0
    %203 = vmatpush1.msra.mxu0 0.0
    %204 = vmatprep.subr.mxu0 0.0
    %205 = vmatpush1.msra.mxu0 0.0
    %206 = vmatprep.subr.mxu0 0.0
    %207 = vmatpush1.msra.mxu0 0.0
    %208 = vmatprep.subr.mxu0 0.0
    %209 = vmatpush1.msra.mxu0 0.0
    %210 = vmatprep.subr.mxu0 0.0
    %211 = vmatpush1.msra.mxu0 %v172
    %212 = vmatprep.subr.mxu0 0.0
    %213 = vmatpush1.msra.mxu0 %v171
    %214 = vmatprep.subr.mxu0 0.0
    %215 = vmatpush1.msra.mxu0 %v170
    %216 = vmatprep.subr.mxu0 0.0
    %217 = vmatpush1.msra.mxu0 %v169
    %218 = vmatprep.subr.mxu0 0.0
    %219 = vmatpush2.msra.mxu0 0.0
    %220 = vmatprep.subr.mxu0 0.0
    %221 = vmatpush2.msra.mxu0 0.0
    %222 = vmatprep.subr.mxu0 0.0
    %223 = vmatpush2.msra.mxu0 0.0
    %224 = vmatprep.subr.mxu0 0.0
    %225 = vmatpush2.msra.mxu0 0.0
    %226 = vmatprep.subr.mxu0 0.0
    %227 = vmatpush2.msra.mxu0 0.0
    %228 = vmatprep.subr.mxu0 0.0
    %229 = vmatpush2.msra.mxu0 0.0
    %230 = vmatprep.subr.mxu0 0.0
    %231 = vmatpush2.msra.mxu0 0.0
    %232 = vmatprep.subr.mxu0 0.0
    %233 = vmatpush2.msra.mxu0 0.0
    %234 = vmatprep.subr.mxu0 0.0
    %235 = vmatpush2.msra.mxu0 0.0
    %236 = vmatprep.subr.mxu0 0.0
    %237 = vmatpush2.msra.mxu0 0.0
    %238 = vmatprep.subr.mxu0 0.0
    %239 = vmatpush2.msra.mxu0 0.0
    %240 = vmatprep.subr.mxu0 0.0
    %241 = vmatpush2.msra.mxu0 0.0
    %242 = vmatprep.subr.mxu0 0.0
    %243 = vmatpush2.msra.mxu0 0.0
    %244 = vmatprep.subr.mxu0 0.0
    %245 = vmatpush2.msra.mxu0 0.0
    %246 = vmatprep.subr.mxu0 0.0
    %247 = vmatpush2.msra.mxu0 0.0
    %248 = vmatprep.subr.mxu0 0.0
    %249 = vmatpush2.msra.mxu0 0.0
    %250 = vmatprep.mubr.f32.mxu0 0.0
    %251 = vmatmul.mubr.f32.gmra.mxu0 %v175
    %v252 = vpop.f32.mrf.mxu0
    %v253 = vadd.f32 0.0, %v252
    %v254 = vpop.f32.mrf.mxu0
    %255 = vmatprep.mubr.f32.mxu0 0.0
    %256 = vmatmul.mubr.f32.gmra.mxu0 %v178
    %v257 = vpop.f32.mrf.mxu0
    %v258 = vadd.f32 0.0, %v257
    %v259 = vpop.f32.mrf.mxu0
    %260 = vmatprep.mubr.f32.mxu0 0.0
    %261 = vmatmul.mubr.f32.gmra.mxu0 %v181
    %v262 = vpop.f32.mrf.mxu0
    %v263 = vadd.f32 0.0, %v262
    %v264 = vpop.f32.mrf.mxu0
    %265 = vmatprep.mubr.f32.mxu0 0.0
    %266 = vmatmul.mubr.f32.gmra.mxu0 %v184
    %v267 = vpop.f32.mrf.mxu0
    %v268 = vadd.f32 0.0, %v267
    %v269 = vpop.f32.mrf.mxu0
    %270 = vdwg.mxu0
    %vm275 = vcmask 1046528
    %v276 = vrot.slane %v253, 1
    %v277 = vrot.slane %v258, 1
    %v278 = vsel %vm275, %v276, %v277
    %v279 = vrot.slane %v263, 1
    %v280 = vrot.slane %v268, 1
    %v281 = vsel %vm275, %v279, %v280
    %282 = vrot.lane.b32.xlu0 %v278, 120
    %v283 = vpop.permute.xlu0 %282
    %284 = vrot.lane.b32.xlu0 %v277, 120
    %v285 = vpop.permute.xlu0 %284
    %286 = vrot.lane.b32.xlu0 %v281, 120
    %v287 = vpop.permute.xlu0 %286
    %288 = vrot.lane.b32.xlu0 %v280, 120
    %v289 = vpop.permute.xlu0 %288
    %v294 = vadd.f32 %v253, %v283
    %v295 = vadd.f32 %v258, %v285
    %v296 = vadd.f32 %v263, %v287
    %v297 = vadd.f32 %v268, %v289
    %vm298 = vcmask 64512
    %v299 = vsel %vm298, %v294, -inf
    %vm300 = vcmask 63488
    %v301 = vsel %vm300, %v295, -inf
    %v302 = vmax.f32 %v299, %v301
    %v303 = vrot.slane %v302, 4
    %v304 = vmax.f32 %v302, %v303
    %v305 = vrot.slane %v304, 2
    %v306 = vmax.f32 %v304, %v305
    %v307 = vrot.slane %v306, 1
    %v308 = vmax.f32 %v306, %v307
    %v309 = vsel %vm298, %v296, -inf
    %v310 = vsel %vm300, %v297, -inf
    %v311 = vmax.f32 %v309, %v310
    %v312 = vrot.slane %v311, 4
    %v313 = vmax.f32 %v311, %v312
    %v314 = vrot.slane %v313, 2
    %v315 = vmax.f32 %v313, %v314
    %v316 = vrot.slane %v315, 1
    %v317 = vmax.f32 %v315, %v316
    %vm318 = vcmask 1045504
    %v319 = vrot.slane %v253, 2
    %v320 = vrot.slane %v258, 2
    %v321 = vsel %vm318, %v319, %v320
    %v322 = vrot.slane %v263, 2
    %v323 = vrot.slane %v268, 2
    %v324 = vsel %vm318, %v322, %v323
    %325 = vrot.lane.b32.xlu0 %v321, 112
    %v326 = vpop.permute.xlu0 %325
    %327 = vrot.lane.b32.xlu0 %v320, 112
    %v328 = vpop.permute.xlu0 %327
    %329 = vrot.lane.b32.xlu0 %v324, 112
    %v330 = vpop.permute.xlu0 %329
    %331 = vrot.lane.b32.xlu0 %v323, 112
    %v332 = vpop.permute.xlu0 %331
    %v337 = vadd.f32 %v294, %v326
    %v338 = vadd.f32 %v295, %v328
    %v339 = vadd.f32 %v296, %v330
    %v340 = vadd.f32 %v297, %v332
    %vm341 = vcmask 195712
    %v342 = vsel %vm341, %v337, -inf
    %vm343 = vcmask 193664
    %v344 = vsel %vm343, %v338, -inf
    %v345 = vmax.f32 %v342, %v344
    %v346 = vrot.slane %v345, 4
    %v347 = vmax.f32 %v345, %v346
    %v348 = vrot.slane %v347, 2
    %v349 = vmax.f32 %v347, %v348
    %v350 = vrot.slane %v349, 1
    %v351 = vmax.f32 %v349, %v350
    %v352 = vsel %vm341, %v339, -inf
    %v353 = vsel %vm343, %v340, -inf
    %v354 = vmax.f32 %v352, %v353
    %v355 = vrot.slane %v354, 4
    %v356 = vmax.f32 %v354, %v355
    %v357 = vrot.slane %v356, 2
    %v358 = vmax.f32 %v356, %v357
    %v359 = vrot.slane %v358, 1
    %v360 = vmax.f32 %v358, %v359
    %vm361 = vcmask 1044480
    %v362 = vrot.slane %v253, 3
    %v363 = vrot.slane %v258, 3
    %v364 = vsel %vm361, %v362, %v363
    %v365 = vrot.slane %v263, 3
    %v366 = vrot.slane %v268, 3
    %v367 = vsel %vm361, %v365, %v366
    %368 = vrot.lane.b32.xlu0 %v364, 104
    %v369 = vpop.permute.xlu0 %368
    %370 = vrot.lane.b32.xlu0 %v363, 104
    %v371 = vpop.permute.xlu0 %370
    %372 = vrot.lane.b32.xlu0 %v367, 104
    %v373 = vpop.permute.xlu0 %372
    %374 = vrot.lane.b32.xlu0 %v366, 104
    %v375 = vpop.permute.xlu0 %374
    %v380 = vadd.f32 %v337, %v369
    %v381 = vadd.f32 %v338, %v371
    %v382 = vadd.f32 %v339, %v373
    %v383 = vadd.f32 %v340, %v375
    %vm384 = vcmask 392512
    %v385 = vsel %vm384, %v380, -inf
    %vm386 = vcmask 389440
    %v387 = vsel %vm386, %v381, -inf
    %v388 = vmax.f32 %v385, %v387
    %v389 = vrot.slane %v388, 4
    %v390 = vmax.f32 %v388, %v389
    %v391 = vrot.slane %v390, 2
    %v392 = vmax.f32 %v390, %v391
    %v393 = vrot.slane %v392, 1
    %v394 = vmax.f32 %v392, %v393
    %v395 = vsel %vm384, %v382, -inf
    %v396 = vsel %vm386, %v383, -inf
    %v397 = vmax.f32 %v395, %v396
    %v398 = vrot.slane %v397, 4
    %v399 = vmax.f32 %v397, %v398
    %v400 = vrot.slane %v399, 2
    %v401 = vmax.f32 %v399, %v400
    %v402 = vrot.slane %v401, 1
    %v403 = vmax.f32 %v401, %v402
    %vm406 = vcmask 1041409
    %v407 = vsel %vm406, %v317, %v308
    %v411 = vsel %vm406, %v360, %v351
    %412 = vrot.lane.b32.xlu0 %v411, 120
    %v413 = vpop.permute.xlu0 %412
    %v417 = vsel %vm406, %v403, %v394
    %418 = vrot.lane.b32.xlu0 %v417, 104
    %v419 = vpop.permute.xlu0 %418
    %v421 = vsel %vm298, %v407, %v413
    %vm422 = vcmask 130048
    %v423 = vsel %vm422, %v421, %v419
    %v424 = vld [vmem:[%s4] sm:$0x1]
    %v426 = vlaneseq
    %v427 = vshrl.u32 %v426, 7
    %v428 = vsub.s32 0, %v427
    %v429 = vrot.slane %v424, %v428
    %v431 = vadd.f32 %v423, %v429
    %v432 = vmax.f32 %v431, 0.0
    %v433 = vld [vmem:[%s5] sm:$0xff]
    %v434 = vld [vmem:[%s5 + $0x8] sm:$0xff]
    %v435 = vld [vmem:[%s5 + $0x10] sm:$0xff]
    %v436 = vld [vmem:[%s6] sm:$0x1]
    %v438 = vlaneseq
    %v439 = vshrl.u32 %v438, 7
    %v440 = vsub.s32 0, %v439
    %v441 = vrot.slane %v436, %v440
    %vm443 = vcmask 195584
    %v445 = vsel %vm443, %v432, 0
    %447 = vmatprep.subr.mxu0 0.0
    %448 = vmatpush1.msra.mxu0 0.0
    %449 = vmatprep.subr.mxu0 0.0
    %450 = vmatpush1.msra.mxu0 0.0
    %451 = vmatprep.subr.mxu0 0.0
    %452 = vmatpush1.msra.mxu0 0.0
    %453 = vmatprep.subr.mxu0 0.0
    %454 = vmatpush1.msra.mxu0 0.0
    %455 = vmatprep.subr.mxu0 0.0
    %456 = vmatpush1.msra.mxu0 0.0
    %457 = vmatprep.subr.mxu0 0.0
    %458 = vmatpush1.msra.mxu0 0.0
    %459 = vmatprep.subr.mxu0 0.0
    %460 = vmatpush1.msra.mxu0 0.0
    %461 = vmatprep.subr.mxu0 0.0
    %462 = vmatpush1.msra.mxu0 0.0
    %463 = vmatprep.subr.mxu0 0.0
    %464 = vmatpush1.msra.mxu0 0.0
    %465 = vmatprep.subr.mxu0 0.0
    %466 = vmatpush1.msra.mxu0 0.0
    %467 = vmatprep.subr.mxu0 0.0
    %468 = vmatpush1.msra.mxu0 0.0
    %469 = vmatprep.subr.mxu0 0.0
    %470 = vmatpush1.msra.mxu0 0.0
    %471 = vmatprep.subr.mxu0 0.0
    %472 = vmatpush1.msra.mxu0 0.0
    %473 = vmatprep.subr.mxu0 0.0
    %474 = vmatpush1.msra.mxu0 %v435
    %475 = vmatprep.subr.mxu0 0.0
    %476 = vmatpush1.msra.mxu0 %v434
    %477 = vmatprep.subr.mxu0 0.0
    %478 = vmatpush1.msra.mxu0 %v433
    %479 = vmatprep.subr.mxu0 0.0
    %480 = vmatpush2.msra.mxu0 0.0
    %481 = vmatprep.subr.mxu0 0.0
    %482 = vmatpush2.msra.mxu0 0.0
    %483 = vmatprep.subr.mxu0 0.0
    %484 = vmatpush2.msra.mxu0 0.0
    %485 = vmatprep.subr.mxu0 0.0
    %486 = vmatpush2.msra.mxu0 0.0
    %487 = vmatprep.subr.mxu0 0.0
    %488 = vmatpush2.msra.mxu0 0.0
    %489 = vmatprep.subr.mxu0 0.0
    %490 = vmatpush2.msra.mxu0 0.0
    %491 = vmatprep.subr.mxu0 0.0
    %492 = vmatpush2.msra.mxu0 0.0
    %493 = vmatprep.subr.mxu0 0.0
    %494 = vmatpush2.msra.mxu0 0.0
    %495 = vmatprep.subr.mxu0 0.0
    %496 = vmatpush2.msra.mxu0 0.0
    %497 = vmatprep.subr.mxu0 0.0
    %498 = vmatpush2.msra.mxu0 0.0
    %499 = vmatprep.subr.mxu0 0.0
    %500 = vmatpush2.msra.mxu0 0.0
    %501 = vmatprep.subr.mxu0 0.0
    %502 = vmatpush2.msra.mxu0 0.0
    %503 = vmatprep.subr.mxu0 0.0
    %504 = vmatpush2.msra.mxu0 0.0
    %505 = vmatprep.subr.mxu0 0.0
    %506 = vmatpush2.msra.mxu0 0.0
    %507 = vmatprep.subr.mxu0 0.0
    %508 = vmatpush2.msra.mxu0 0.0
    %509 = vmatprep.subr.mxu0 0.0
    %510 = vmatpush2.msra.mxu0 0.0
    %511 = vmatprep.mubr.f32.mxu0 0.0
    %512 = vmatmul.mubr.f32.gmra.mxu0 %v445
    %v513 = vpop.f32.mrf.mxu0
    %v514 = vadd.f32 %v441, %v513
    %v515 = vpop.f32.mrf.mxu0
    %516 = vdwg.mxu0
    %517 = vst [vmem:[#allocation2] sm:$0x3] %v514
    %vm518 = vcmp.lt.s32.totalorder %v35, 5
    %v519 = vsel %vm518, %v514, -1e+30
    %v520 = vsel %vm80, %v519, -inf
    %521 = vmax.xlane.f32.xlu0 %v520
    %v522 = vpop.xlane.xlu0 %521
    %v523 = vsub.f32 %v519, %v522
    %v524 = vmul.f32 %v523, 1.442695
    %v525 = vpow.pop %v524
    %v526 = vsel %vm80, %v525, 0.0
    %527 = vadd.xlane.f32.xlu0 %v526
    %v528 = vpop.xlane.xlu0 %527
    %v529 = vlog2.pop %v528
    %v530 = vmul.f32 %v529, 0.6931472
    %v531 = vadd.f32 %v522, %v530
    %v532 = vld [vmem:[%s1] sm:$0x3]
    %533 = vset.pattern.permute.xlu0 0
    %534 = vperm.xlu0 %533, %v532
    %v535 = vpop.permute.xlu0 %534
    %vm536 = vcmp.eq.s32.totalorder %v35, %v535
    %v537 = vsel %vm536, %v514, 0.0
    %v538 = vsel %vm80, %v537, 0.0
    %539 = vadd.xlane.f32.xlu0 %v538
    %v540 = vpop.xlane.xlu0 %539
    %v541 = vsub.f32 %v531, %v540
    %vm542 = vcmask 1024
    %v543 = vsel %vm542, %v541, 0.0
    %544 = vadd.xlane.f32.xlu0 %v543
    %v545 = vpop.xlane.xlu0 %544
    %v546 = vrot.slane %v545, 4
    %v547 = vadd.f32 %v545, %v546
    %v548 = vrot.slane %v547, 2
    %v549 = vadd.f32 %v547, %v548
    %v550 = vrot.slane %v549, 1
    %v551 = vadd.f32 %v549, %v550
    %s552 = vtos %v551
    %v553 = vrcp.pop 2.0
    %s554 = vtos %v553
    %s555 = smul.f32 %s552, %s554
    %v556 = vstv %s555
    %vm557 = vcmask 0
    %558 = vst.msk [vmem:[#allocation4] sm:$0x1] %vm557, %v556
    // Predicated region
    $region30: #{cnn_classifier_forward.1} parent=1 // pred_check
      _
    $region31: #{cnn_classifier_forward.1} parent=1 // pred_check_branch
      %560 = sbr.rel (0) target = $region33
    $region32: #{cnn_classifier_forward.1} parent=1 // pred_region
      %s562 = ssub.s32 32, 32
      %563 = vsyncadd [#allocation3], %s562
      %s565 = sshll.u32 [#allocation2], 4
      %s566 = int_to_ptr.vmem [resolvable:$true] %s565
      %568 = dma.vmem_to_hbm [thread:$0]  %s566, 32, %s7, [#allocation3]
    $region33: #{cnn_classifier_forward.1} parent=1 // pred_fallthru
      _
    // Predicated region
    $region34: #{cnn_classifier_forward.1} parent=1 // pred_check
      _
    $region35: #{cnn_classifier_forward.1} parent=1 // pred_check_branch
      %570 = sbr.rel (0) target = $region37
    $region36: #{cnn_classifier_forward.1} parent=1 // pred_region
      %s572 = ssub.s32 16, 16
      %573 = vsyncadd [#allocation5], %s572
      %s575 = sshll.u32 [#allocation4], 4
      %s576 = int_to_ptr.vmem [resolvable:$true] %s575
      %578 = dma.vmem_to_hbm [thread:$0]  %s576, 16, %s8, [#allocation5]
    $region37: #{cnn_classifier_forward.1} parent=1 // pred_fallthru
      _
    // Predicated region
    $region38: #{cnn_classifier_forward.1} parent=1 // pred_check
      _
    $region39: #{cnn_classifier_forward.1} parent=1 // pred_check_branch
      %580 = sbr.rel (0) target = $region41
    $region40: #{cnn_classifier_forward.1} parent=1 // pred_region
      %581 = dma.done [#allocation3], 32
    $region41: #{cnn_classifier_forward.1} parent=1 // pred_fallthru
      _
    // Predicated region
    $region42: #{cnn_classifier_forward.1} parent=1 // pred_check
      _
    $region43: #{cnn_classifier_forward.1} parent=1 // pred_check_branch
      %583 = sbr.rel (0) target = $region45
    $region44: #{cnn_classifier_forward.1} parent=1 // pred_region
      %584 = dma.done [#allocation5], 16
    $region45: #{cnn_classifier_forward.1} parent=1 // pred_fallthru
      _
    %585 = vsyncpa [#allocation3], 1
    %586 = vsyncpa [#allocation5], 1

</llo_original>
